<compile_context>
chip_gen: v7x
topology: tpu7x:2x2x1
jax: 0.10.0
libtpu: 0.0.40
codegen_flags: <defaults>
</compile_context>

<pallas_src>
import functools
import math

import jax
import jax.numpy as jnp
from jax.experimental import pallas as pl
from jax.experimental.pallas import tpu as pltpu

LANE = 128
SUBLANE = 8


def _make_kernel(num_inputs: int, activation=None):
    def kernel(w_ref, *refs):
        # w_ref : SMEM (num_inputs,) float32, already relu+normalized weights
        # refs  : num_inputs VMEM input blocks (TR, WIDTH) + 1 output block
        x_refs = refs[:num_inputs]
        o_ref = refs[num_inputs]
        acc = x_refs[0][...].astype(jnp.float32) * w_ref[0]
        for i in range(1, num_inputs):
            acc = acc + x_refs[i][...].astype(jnp.float32) * w_ref[i]
        if activation in ("swish", "silu"):
            # Fused BiFPN activation epilogue: EUP/VALU slack under DMA is free.
            acc = acc * jax.nn.sigmoid(acc)
        o_ref[...] = acc.astype(o_ref.dtype)

    return kernel


def _vmem_capacity_bytes() -> int:
    """Physical VMEM capacity (per TensorCore), with a safe fallback."""
    try:
        info = pltpu.get_tpu_info()
        cap = getattr(info, "vmem_capacity_bytes", None)
        if cap:
            return int(cap)
    except Exception:
        pass
    return 64 << 20  # conservative fallback (v7x per-TC physical size)


def _hw_config(num_inputs: int):
    """Return (target_bytes_per_operand_block, budget_bytes, vmem_limit_bytes, multi_tc)."""
    kind = ""
    try:
        kind = jax.devices()[0].device_kind.lower()
    except Exception:
        pass
    cap = _vmem_capacity_bytes()

    if "v7" in kind:
        multi_tc = True  # 2 TensorCores/chip share a "parallel" grid axis
        target = (4 << 20) if num_inputs <= 4 else (2 << 20)
    elif "v6" in kind:
        multi_tc = False
        target = 2 << 20
    elif "v5p" in kind or "v4" in kind:
        multi_tc = True  # megacore parts
        target = 2 << 20
    else:  # v5e / unknown
        multi_tc = False
        target = 2 << 20

    # Explicit scoped-VMEM limit: ~3/4 of physical capacity, capped at 64 MiB
    # (v5e/v6e: 128 MiB physical -> 64 MiB; v7x: 64 MiB physical -> 48 MiB).
    vmem_limit = min(cap * 3 // 4, 64 << 20)
    vmem_limit = max(vmem_limit, 32 << 20)
    budget = vmem_limit - (8 << 20)  # headroom for Pallas/Mosaic internals
    return target, budget, vmem_limit, multi_tc


def _pick_width(total: int):
    """Widest lane-dense last dim that divides the flattened size."""
    for width in (1024, 512, 256, 128):
        if total % width == 0:
            return width
    return None


def _pick_rows(R, width, itemsize, K, target_bytes, budget_bytes, multi_tc):
    """Block rows: per-gen target size, VMEM-budgeted, megacore-balanced."""
    # Sub-32-bit dtypes pack along sublanes: round to the packed tile so stores
    # stay full-width (8 rows for f32, 16 for bf16, 32 for int8/fp8).
    sublane = SUBLANE * max(1, 4 // max(1, itemsize))
    if R <= sublane:
        return R  # block spans the full sublane dim (allowed by the (8,128) rule)

    # (K+1) operands, double-buffered each. Never shrink below ~1 MiB/operand:
    # the explicit vmem_limit above makes that budget available even for big K.
    max_bytes = min(target_bytes, max(budget_bytes // (2 * (K + 1)), 1 << 20))
    tr = max(sublane, (max_bytes // (width * itemsize)) // sublane * sublane)
    tr = min(tr, (R // sublane) * sublane)  # block must not exceed the array

    if multi_tc and R >= 4 * sublane:
        # Megacore: prefer an even grid-step count >= 4 (>= 2 steps/core) so
        # both cores stay busy, balanced, and pipelined. Pick the largest TR
        # (<= current) that satisfies this; keep TR if none exists.
        t = tr
        while t >= sublane:
            steps = -(-R // t)
            if steps >= 4 and steps % 2 == 0:
                tr = t
                break
            t -= sublane
    return max(tr, sublane)


@functools.partial(jax.jit, static_argnames=("eps", "activation"))
def wbifpn_add(weights, inputs, eps=1e-4, activation=None):
    """weights: (K,) float32; inputs: tuple/list of K same-shaped arrays."""
    inputs = tuple(inputs)
    K = len(inputs)
    shape = inputs[0].shape
    dtype = inputs[0].dtype
    assert weights.shape == (K,)
    for x in inputs:
        assert x.shape == shape and x.dtype == dtype, "all inputs must match"
    total = math.prod(shape)
    itemsize = jnp.dtype(dtype).itemsize

    # Normalize the K scalar weights once in the wrapper (K scalars only).
    w = jnp.maximum(weights.astype(jnp.float32), jnp.float32(0.0))
    norm_w = w / (jnp.sum(w) + jnp.float32(eps))

    width = _pick_width(total)
    if width is not None:
        # Fast path: pure reshape (free bitcast), no pad, no output slice.
        R = total // width
        flats = [x.reshape(R, width) for x in inputs]
        ragged = False
    else:
        # Ragged fallback: pad each flat input to a lane multiple, slice output.
        # TODO(synk): handle the tail with an in-kernel masked final block
        # instead of pad+slice (removes ~2x extra HBM traffic on this path).
        width = LANE
        padded = -(-total // LANE) * LANE
        R = padded // width
        flats = [jnp.pad(x.reshape(-1), (0, padded - total)).reshape(R, width)
                 for x in inputs]
        ragged = True

    target_bytes, budget_bytes, vmem_limit, multi_tc = _hw_config(K)
    TR = _pick_rows(R, width, itemsize, K, target_bytes, budget_bytes, multi_tc)
    grid = (pl.cdiv(R, TR),)

    cost = pl.CostEstimate(
        flops=(2 * K - 1) * total,
        transcendentals=total if activation in ("swish", "silu") else 0,
        bytes_accessed=(K + 1) * total * itemsize,
    )

    # Default Buffered(2) pipelining is kept deliberately: the op is DMA
    # throughput-bound, so extra VMEM is spent on bigger TR, not deeper buffers.
    x_spec = pl.BlockSpec((TR, width), lambda r: (r, 0))
    out2d = pl.pallas_call(
        _make_kernel(K, activation),
        out_shape=jax.ShapeDtypeStruct((R, width), dtype),
        grid_spec=pltpu.PrefetchScalarGridSpec(
            num_scalar_prefetch=0,
            grid=grid,
            in_specs=[pl.BlockSpec(memory_space=pltpu.MemorySpace.SMEM)]  # norm_w
                     + [x_spec] * K,                                      # K inputs
            out_specs=pl.BlockSpec((TR, width), lambda r: (r, 0)),
        ),
        compiler_params=pltpu.CompilerParams(
            dimension_semantics=("parallel",),
            vmem_limit_bytes=int(vmem_limit),
        ),
        cost_estimate=cost,
    )(norm_w, *flats)

    if ragged:
        return out2d.reshape(-1)[:total].reshape(shape)
    return out2d.reshape(shape)


if __name__ == "__main__":
    key = jax.random.PRNGKey(0)
    num_inputs = 3
    B, C, H, W = 2, 4, 16, 16  # NCHW, matching PyTorch convention

    keys = jax.random.split(key, num_inputs)
    inputs = tuple(
        jax.random.normal(k, (B, C, H, W), dtype=jnp.float32) for k in keys
    )

    # Parameter init matches nn.Parameter(torch.ones(num_inputs)).
    weights = jnp.ones((num_inputs,), dtype=jnp.float32)
    eps = 1e-4

    out = wbifpn_add(weights, inputs, eps=eps)
    out = jax.block_until_ready(out)

    # Pure-JAX reference for verification.
    w = jnp.maximum(weights, 0.0)
    norm_w = w / (jnp.sum(w) + eps)
    ref = sum(norm_w[i] * inputs[i] for i in range(num_inputs))

    assert out.shape == (B, C, H, W) and out.dtype == jnp.float32
    assert jnp.allclose(out, ref, atol=1e-5, rtol=1e-5)
    print("KERNEL_OK")
</pallas_src>

<mosaic_0001>
module attributes {stable_mosaic.version = 11 : i64} {
  func.func @kernel(%arg0: i32, %arg1: memref<3xf32, #tpu.memory_space<smem>>, %arg2: memref<2x1024xf32, #tpu.memory_space<vmem>>, %arg3: memref<2x1024xf32, #tpu.memory_space<vmem>>, %arg4: memref<2x1024xf32, #tpu.memory_space<vmem>>, %arg5: memref<2x1024xf32, #tpu.memory_space<vmem>>) attributes {dimension_semantics = [#tpu.dimension_semantics<parallel>], iteration_bounds = array<i64: 1>, scalar_prefetch = 0 : i64, scratch_operands = 0 : i64, tpu.core_type = #tpu.core_type<tc>, window_params = [{transform_indices = @transform_0, window_bounds = array<i64: 3>}, {transform_indices = @transform_1, window_bounds = array<i64: 2, 1024>}, {transform_indices = @transform_2, window_bounds = array<i64: 2, 1024>}, {transform_indices = @transform_3, window_bounds = array<i64: 2, 1024>}, {transform_indices = @transform_4, window_bounds = array<i64: 2, 1024>}]} {
    %c0 = arith.constant 0 : index
    %c0_0 = arith.constant 0 : index
    %0 = vector.load %arg2[%c0, %c0_0] : memref<2x1024xf32, #tpu.memory_space<vmem>>, vector<2x1024xf32>
    %c0_1 = arith.constant 0 : index
    %1 = memref.load %arg1[%c0_1] : memref<3xf32, #tpu.memory_space<smem>>
    %2 = vector.broadcast %1 : f32 to vector<2x1024xf32>
    %3 = arith.mulf %0, %2 : vector<2x1024xf32>
    %c0_2 = arith.constant 0 : index
    %c0_3 = arith.constant 0 : index
    %4 = vector.load %arg3[%c0_2, %c0_3] : memref<2x1024xf32, #tpu.memory_space<vmem>>, vector<2x1024xf32>
    %c1 = arith.constant 1 : index
    %5 = memref.load %arg1[%c1] : memref<3xf32, #tpu.memory_space<smem>>
    %6 = vector.broadcast %5 : f32 to vector<2x1024xf32>
    %7 = arith.mulf %4, %6 : vector<2x1024xf32>
    %8 = arith.addf %3, %7 : vector<2x1024xf32>
    %c0_4 = arith.constant 0 : index
    %c0_5 = arith.constant 0 : index
    %9 = vector.load %arg4[%c0_4, %c0_5] : memref<2x1024xf32, #tpu.memory_space<vmem>>, vector<2x1024xf32>
    %c2 = arith.constant 2 : index
    %10 = memref.load %arg1[%c2] : memref<3xf32, #tpu.memory_space<smem>>
    %11 = vector.broadcast %10 : f32 to vector<2x1024xf32>
    %12 = arith.mulf %9, %11 : vector<2x1024xf32>
    %13 = arith.addf %8, %12 : vector<2x1024xf32>
    %c0_6 = arith.constant 0 : index
    %c0_7 = arith.constant 0 : index
    %14 = vector.load %arg5[%c0_6, %c0_7] : memref<2x1024xf32, #tpu.memory_space<vmem>>, vector<2x1024xf32>
    tpu.vector_store %arg5[%c0_6, %c0_7], %13 {strides = array<i32>} : memref<2x1024xf32, #tpu.memory_space<vmem>>, vector<2x1024xf32>,
    return
  }
  func.func @transform_0(%arg0: i32) -> i32 {
    %c0_i32 = arith.constant 0 : i32
    %c0_i32_0 = arith.constant 0 : i32
    return %c0_i32 : i32
  }
  func.func @transform_1(%arg0: i32) -> (i32, i32) {
    %c0_i32 = arith.constant 0 : i32
    %c0_i32_0 = arith.constant 0 : i32
    return %arg0, %c0_i32 : i32, i32
  }
  func.func @transform_2(%arg0: i32) -> (i32, i32) {
    %c0_i32 = arith.constant 0 : i32
    %c0_i32_0 = arith.constant 0 : i32
    return %arg0, %c0_i32 : i32, i32
  }
  func.func @transform_3(%arg0: i32) -> (i32, i32) {
    %c0_i32 = arith.constant 0 : i32
    %c0_i32_0 = arith.constant 0 : i32
    return %arg0, %c0_i32 : i32, i32
  }
  func.func @transform_4(%arg0: i32) -> (i32, i32) {
    %c0_i32 = arith.constant 0 : i32
    %c0_i32_0 = arith.constant 0 : i32
    return %arg0, %c0_i32 : i32, i32
  }
}

</mosaic_0001>

<llo_original>
// kernel: wbifpn_add.1
$region0: #{wbifpn_add.1}
  #allocation0 [shape = 'u32[]', space=smem, size = 0x4, offset = 0x4, fixed_abs, tag = 'smem constant byte address 0x4 - core index']
  #allocation1 [shape = 'u32[144,128]{1,0:T(1,128)}', space=vmem, size = 0x12000, scoped, tag = 'internal scratch']
  %s0 = inlined_call_operand.vmem [shape: f32[3], index: 0, kind: input, shape index: {}]
  %s1 = inlined_call_operand.vmem [shape: f32[2,1024], index: 1, kind: input, shape index: {}]
  %s2 = inlined_call_operand.vmem [shape: f32[2,1024], index: 2, kind: input, shape index: {}]
  %s3 = inlined_call_operand.vmem [shape: f32[2,1024], index: 3, kind: input, shape index: {}]
  %s4 = inlined_call_operand.vmem [shape: f32[2,1024], index: 4, kind: output, shape index: {}]
  %s5 = sld [smem:[#allocation0]]
  $region30: #{wbifpn_add.1} parent=0
    _
  %s7 = ssub.s32 1, %s5
  %s8 = scalar_select 0, %s7, %s5
  $region1: #{wbifpn_add.1} parent=0
    #allocation2 [shape = 'u8[512]{0}', space=smem, size = 0x200, scoped, tag = 'input window, operand 0, single buffered']
    #allocation3 [shape = 's32[1]{0}', space=sflag, size = 0x4, scoped, tag = 'scoped memory for wbifpn_add.1']
    %9 = vsyncpa [#allocation3], 0
    // Predicated region
    $region2: #{wbifpn_add.1} parent=1 // pred_check
      _
    $region3: #{wbifpn_add.1} parent=1 // pred_check_branch
      %11 = sbr.rel (0) target = $region5
    $region4: #{wbifpn_add.1} parent=1 // pred_region
      %s13 = ssub.s32 16, 16
      %14 = vsyncadd [#allocation3], %s13
      %s16 = sshll.u32 %s0, 4
      %s17 = int_to_ptr.vmem [resolvable:$true] %s16
      %19 = dma.vmem_to_smem %s17, 16, [#allocation2], [#allocation3]
    $region5: #{wbifpn_add.1} parent=1 // pred_fallthru
      _
    // Predicated region
    $region6: #{wbifpn_add.1} parent=1 // pred_check
      _
    $region7: #{wbifpn_add.1} parent=1 // pred_check_branch
      %21 = sbr.rel (0) target = $region9
    $region8: #{wbifpn_add.1} parent=1 // pred_region
      _
    $region9: #{wbifpn_add.1} parent=1 // pred_fallthru
      _
    // Predicated region
    $region10: #{wbifpn_add.1} parent=1 // pred_check
      _
    $region11: #{wbifpn_add.1} parent=1 // pred_check_branch
      %23 = sbr.rel (0) target = $region13
    $region12: #{wbifpn_add.1} parent=1 // pred_region
      _
    $region13: #{wbifpn_add.1} parent=1 // pred_fallthru
      _
    // Predicated region
    $region14: #{wbifpn_add.1} parent=1 // pred_check
      _
    $region15: #{wbifpn_add.1} parent=1 // pred_check_branch
      %25 = sbr.rel (0) target = $region17
    $region16: #{wbifpn_add.1} parent=1 // pred_region
      _
    $region17: #{wbifpn_add.1} parent=1 // pred_fallthru
      _
    // Predicated region
    $region18: #{wbifpn_add.1} parent=1 // pred_check
      _
    $region19: #{wbifpn_add.1} parent=1 // pred_check_branch
      %27 = sbr.rel (0) target = $region21
    $region20: #{wbifpn_add.1} parent=1 // pred_region
      %28 = dma.done [#allocation3], 16
    $region21: #{wbifpn_add.1} parent=1 // pred_fallthru
      _
    %29 = sfence
    %v30 = vld [vmem:[%s1] sm:$0xff]
    %v31 = vld [vmem:[%s1 + $0x8] sm:$0xff]
    %s32 = sld [smem:[#allocation2]]
    %v33 = vstv %s32
    %v34 = vmul.f32 %v30, %v33
    %v35 = vmul.f32 %v31, %v33
    %v36 = vld [vmem:[%s2] sm:$0xff]
    %v37 = vld [vmem:[%s2 + $0x8] sm:$0xff]
    %s38 = sld [smem:[#allocation2 + $0x1]]
    %v39 = vstv %s38
    %v40 = vmul.f32 %v36, %v39
    %v41 = vmul.f32 %v37, %v39
    %v42 = vadd.f32 %v34, %v40
    %v43 = vadd.f32 %v35, %v41
    %v44 = vld [vmem:[%s3] sm:$0xff]
    %v45 = vld [vmem:[%s3 + $0x8] sm:$0xff]
    %s46 = sld [smem:[#allocation2 + $0x2]]
    %v47 = vstv %s46
    %v48 = vmul.f32 %v44, %v47
    %v49 = vmul.f32 %v45, %v47
    %v50 = vadd.f32 %v42, %v48
    %v51 = vadd.f32 %v43, %v49
    %52 = vst [vmem:[%s4] sm:$0xff] %v50
    %53 = vst [vmem:[%s4 + $0x8] sm:$0xff] %v51
    // Predicated region
    $region22: #{wbifpn_add.1} parent=1 // pred_check
      _
    $region23: #{wbifpn_add.1} parent=1 // pred_check_branch
      %55 = sbr.rel (0) target = $region25
    $region24: #{wbifpn_add.1} parent=1 // pred_region
      _
    $region25: #{wbifpn_add.1} parent=1 // pred_fallthru
      _
    // Predicated region
    $region26: #{wbifpn_add.1} parent=1 // pred_check
      _
    $region27: #{wbifpn_add.1} parent=1 // pred_check_branch
      %57 = sbr.rel (0) target = $region29
    $region28: #{wbifpn_add.1} parent=1 // pred_region
      _
    $region29: #{wbifpn_add.1} parent=1 // pred_fallthru
      _
    %58 = vsyncpa [#allocation3], 1

</llo_original>
